<compile_context>
chip_gen: v6e
topology: v6e:2x2x1
jax: 0.10.0
libtpu: 0.0.40
codegen_flags: <defaults>
</compile_context>

<pallas_src>
import jax
import jax.numpy as jnp
from jax.experimental import pallas as pl
from jax.experimental.pallas import tpu as pltpu

_HPAD = 16  # padded hidden width  (>= 10, multiple of 8 sublanes)
_OPAD = 8   # padded output width  (>= 3,  multiple of 8 sublanes)


def _round_up(n, m):
    return ((n + m - 1) // m) * m


def _mlp_kernel(xT_ref, w1T_ref, b1_ref, w2T_ref, b2_ref, o_ref):
    # xT: (4, TB), W1^T: (16, 4), b1: (16, 1), W2^T: (8, 16), b2: (8, 1), out: (8, TB)
    xT = xT_ref[...]                                                        # (4, TB)
    h = jnp.dot(w1T_ref[...], xT, preferred_element_type=jnp.float32)      # (16, TB)
    h = jnp.maximum(h + b1_ref[...], 0.0)                                   # ReLU
    out = jnp.dot(w2T_ref[...], h, preferred_element_type=jnp.float32)     # (8, TB)
    o_ref[...] = (out + b2_ref[...]).astype(o_ref.dtype)


def pack_params(w1, b1, w2, b2):
    """Zero-pad + transpose parameters once for the [features, batch] kernel layout.

    Inputs follow the x @ W + b convention: w1 (4, 10), b1 (10,), w2 (10, 3), b2 (3,).
    Returns W1^T (16, 4), b1 (16, 1), W2^T (8, 16), b2 (8, 1), all f32 zero-padded.
    """
    h, o = w1.shape[1], w2.shape[1]
    w1T = jnp.zeros((_HPAD, 4), jnp.float32).at[:h, :].set(w1.T)
    b1c = jnp.zeros((_HPAD, 1), jnp.float32).at[:h, 0].set(b1)
    w2T = jnp.zeros((_OPAD, _HPAD), jnp.float32).at[:o, :h].set(w2.T)
    b2c = jnp.zeros((_OPAD, 1), jnp.float32).at[:o, 0].set(b2)
    return w1T, b1c, w2T, b2c


def sl_network_forward(x, packed_params, *, block_rows=8192):
    """x: (B, 4) f32; packed_params from pack_params(); returns (B, 3) f32."""
    w1T, b1c, w2T, b2c = packed_params
    B = x.shape[0]
    # Batch tile is the lane dim of every block -> must be a multiple of 128.
    block_rows = _round_up(max(block_rows, 128), 128)
    TB = min(block_rows, _round_up(B, 128))
    Bp = _round_up(B, TB)

    xT = x.T                                   # (4, B) feature-major layout
    if Bp != B:
        xT = jnp.pad(xT, ((0, 0), (0, Bp - B)))  # zero columns; sliced off below

    out = pl.pallas_call(
        _mlp_kernel,
        out_shape=jax.ShapeDtypeStruct((_OPAD, Bp), jnp.float32),
        grid_spec=pltpu.PrefetchScalarGridSpec(
            num_scalar_prefetch=0,
            grid=(Bp // TB,),
            in_specs=[
                pl.BlockSpec((4, TB), lambda i: (0, i)),          # x tiles over batch (lanes)
                pl.BlockSpec((_HPAD, 4), lambda i: (0, 0)),       # weights VMEM-resident
                pl.BlockSpec((_HPAD, 1), lambda i: (0, 0)),
                pl.BlockSpec((_OPAD, _HPAD), lambda i: (0, 0)),
                pl.BlockSpec((_OPAD, 1), lambda i: (0, 0)),
            ],
            out_specs=pl.BlockSpec((_OPAD, TB), lambda i: (0, i)),  # narrow, lane-dense output
        ),
        compiler_params=pltpu.CompilerParams(
            dimension_semantics=("parallel",)),                     # dual-TC sharding on v7x
    )(xT, w1T, b1c, w2T, b2c)
    return out[:3, :B].T


def init_params(key):
    # Deterministic synthetic init matching nn.Linear shapes:
    # fc1: weight (10, 4), bias (10);  fc2: weight (3, 10), bias (3)
    k1, k2, k3, k4 = jax.random.split(key, 4)
    w1_t = jax.random.uniform(k1, (10, 4), jnp.float32, -0.5, 0.5)  # PyTorch layout
    b1 = jax.random.uniform(k2, (10,), jnp.float32, -0.5, 0.5)
    w2_t = jax.random.uniform(k3, (3, 10), jnp.float32, -0.3, 0.3)
    b2 = jax.random.uniform(k4, (3,), jnp.float32, -0.3, 0.3)
    # Transpose to (in, out) for the x @ W convention used by pack_params.
    return w1_t.T, b1, w2_t.T, b2


def _reference(x, w1, b1, w2, b2):
    return jnp.maximum(x @ w1 + b1.reshape(1, -1), 0.0) @ w2 + b2.reshape(1, -1)


if __name__ == "__main__":
    key = jax.random.PRNGKey(0)
    kx, kp = jax.random.split(key)
    w1, b1, w2, b2 = init_params(kp)
    packed = pack_params(w1, b1, w2, b2)

    # Small Iris-like batch (single tile path, batch padded 8 -> 128).
    B = 8
    x = jax.random.normal(kx, (B, 4), jnp.float32)
    out = jax.block_until_ready(sl_network_forward(x, packed))
    ref = _reference(x, w1, b1, w2, b2)
    assert out.shape == (B, 3)
    assert jnp.allclose(out, ref, atol=1e-5, rtol=1e-5)

    # Non-multiple batch with a small tile (exercises batch padding, multi-step
    # 'parallel' grid, and constant-index weight residency).
    B2 = 300
    x2 = jax.random.normal(jax.random.PRNGKey(1), (B2, 4), jnp.float32)
    out2 = jax.block_until_ready(sl_network_forward(x2, packed, block_rows=128))
    ref2 = _reference(x2, w1, b1, w2, b2)
    assert out2.shape == (B2, 3)
    assert jnp.allclose(out2, ref2, atol=1e-5, rtol=1e-5)

    print("KERNEL_OK")
</pallas_src>

<mosaic_0001>
module attributes {stable_mosaic.version = 11 : i64} {
  func.func @_mlp_kernel(%arg0: i32, %arg1: memref<4x128xf32, #tpu.memory_space<vmem>>, %arg2: memref<16x4xf32, #tpu.memory_space<vmem>>, %arg3: memref<16x1xf32, #tpu.memory_space<vmem>>, %arg4: memref<8x16xf32, #tpu.memory_space<vmem>>, %arg5: memref<8x1xf32, #tpu.memory_space<vmem>>, %arg6: memref<8x128xf32, #tpu.memory_space<vmem>>) attributes {dimension_semantics = [#tpu.dimension_semantics<parallel>], iteration_bounds = array<i64: 1>, scalar_prefetch = 0 : i64, scratch_operands = 0 : i64, tpu.core_type = #tpu.core_type<tc>, window_params = [{transform_indices = @transform_0, window_bounds = array<i64: 4, 128>}, {pipeline_mode = #tpu.pipeline_mode<synchronous>, transform_indices = @transform_1, window_bounds = array<i64: 16, 4>}, {pipeline_mode = #tpu.pipeline_mode<synchronous>, transform_indices = @transform_2, window_bounds = array<i64: 16, 1>}, {pipeline_mode = #tpu.pipeline_mode<synchronous>, transform_indices = @transform_3, window_bounds = array<i64: 8, 16>}, {pipeline_mode = #tpu.pipeline_mode<synchronous>, transform_indices = @transform_4, window_bounds = array<i64: 8, 1>}, {transform_indices = @transform_5, window_bounds = array<i64: 8, 128>}]} {
    %c0 = arith.constant 0 : index
    %c0_0 = arith.constant 0 : index
    %0 = vector.load %arg1[%c0, %c0_0] : memref<4x128xf32, #tpu.memory_space<vmem>>, vector<4x128xf32>
    %c0_1 = arith.constant 0 : index
    %c0_2 = arith.constant 0 : index
    %1 = vector.load %arg2[%c0_1, %c0_2] : memref<16x4xf32, #tpu.memory_space<vmem>>, vector<16x4xf32>
    %cst = arith.constant dense<0.000000e+00> : vector<16x128xf32>
    %2 = tpu.matmul %1, %0, %cst {dimension_numbers = #tpu.dot_dimension_numbers<[1], [0], [0], [1], [0, 0, 1, 1], [], []>} : vector<16x4xf32>, vector<4x128xf32>, vector<16x128xf32> -> vector<16x128xf32>
    %c0_3 = arith.constant 0 : index
    %c0_4 = arith.constant 0 : index
    %3 = vector.load %arg3[%c0_3, %c0_4] : memref<16x1xf32, #tpu.memory_space<vmem>>, vector<16x1xf32>
    %4 = vector.broadcast %3 : vector<16x1xf32> to vector<16x128xf32>
    %5 = arith.addf %2, %4 : vector<16x128xf32>
    %cst_5 = arith.constant 0.000000e+00 : f32
    %6 = vector.broadcast %cst_5 : f32 to vector<16x128xf32>
    %7 = arith.maximumf %5, %6 : vector<16x128xf32>
    %c0_6 = arith.constant 0 : index
    %c0_7 = arith.constant 0 : index
    %8 = vector.load %arg4[%c0_6, %c0_7] : memref<8x16xf32, #tpu.memory_space<vmem>>, vector<8x16xf32>
    %cst_8 = arith.constant dense<0.000000e+00> : vector<8x128xf32>
    %9 = tpu.matmul %8, %7, %cst_8 {dimension_numbers = #tpu.dot_dimension_numbers<[1], [0], [0], [1], [0, 0, 1, 1], [], []>} : vector<8x16xf32>, vector<16x128xf32>, vector<8x128xf32> -> vector<8x128xf32>
    %c0_9 = arith.constant 0 : index
    %c0_10 = arith.constant 0 : index
    %10 = vector.load %arg5[%c0_9, %c0_10] : memref<8x1xf32, #tpu.memory_space<vmem>>, vector<8x1xf32>
    %11 = vector.broadcast %10 : vector<8x1xf32> to vector<8x128xf32>
    %12 = arith.addf %9, %11 : vector<8x128xf32>
    %c0_11 = arith.constant 0 : index
    %c0_12 = arith.constant 0 : index
    %13 = vector.load %arg6[%c0_11, %c0_12] : memref<8x128xf32, #tpu.memory_space<vmem>>, vector<8x128xf32>
    tpu.vector_store %arg6[%c0_11, %c0_12], %12 {strides = array<i32>} : memref<8x128xf32, #tpu.memory_space<vmem>>, vector<8x128xf32>,
    return
  }
  func.func @transform_0(%arg0: i32) -> (i32, i32) {
    %c0_i32 = arith.constant 0 : i32
    %c0_i32_0 = arith.constant 0 : i32
    return %c0_i32, %arg0 : i32, i32
  }
  func.func @transform_1(%arg0: i32) -> (i32, i32) {
    %c0_i32 = arith.constant 0 : i32
    %c0_i32_0 = arith.constant 0 : i32
    %c0_i32_1 = arith.constant 0 : i32
    return %c0_i32, %c0_i32_0 : i32, i32
  }
  func.func @transform_2(%arg0: i32) -> (i32, i32) {
    %c0_i32 = arith.constant 0 : i32
    %c0_i32_0 = arith.constant 0 : i32
    %c0_i32_1 = arith.constant 0 : i32
    return %c0_i32, %c0_i32_0 : i32, i32
  }
  func.func @transform_3(%arg0: i32) -> (i32, i32) {
    %c0_i32 = arith.constant 0 : i32
    %c0_i32_0 = arith.constant 0 : i32
    %c0_i32_1 = arith.constant 0 : i32
    return %c0_i32, %c0_i32_0 : i32, i32
  }
  func.func @transform_4(%arg0: i32) -> (i32, i32) {
    %c0_i32 = arith.constant 0 : i32
    %c0_i32_0 = arith.constant 0 : i32
    %c0_i32_1 = arith.constant 0 : i32
    return %c0_i32, %c0_i32_0 : i32, i32
  }
  func.func @transform_5(%arg0: i32) -> (i32, i32) {
    %c0_i32 = arith.constant 0 : i32
    %c0_i32_0 = arith.constant 0 : i32
    return %c0_i32, %arg0 : i32, i32
  }
}

</mosaic_0001>

<llo_original>
// kernel: tpu_custom_call.1
$region0: #{tpu_custom_call.1}
  #allocation0 [shape = 'u32[]', space=smem, size = 0x4, offset = 0x4, fixed_abs, tag = 'smem constant byte address 0x4 - core index']
  #allocation1 [shape = 'u32[144,128]{1,0:T(1,128)}', space=vmem, size = 0x12000, scoped, tag = 'internal scratch']
  %s0 = inlined_call_operand.vmem [shape: f32[4,128], index: 0, kind: input, shape index: {}]
  %s1 = inlined_call_operand.vmem [shape: f32[16,4], index: 1, kind: input, shape index: {}]
  %s2 = inlined_call_operand.vmem [shape: f32[16,1], index: 2, kind: input, shape index: {}]
  %s3 = inlined_call_operand.vmem [shape: f32[8,16], index: 3, kind: input, shape index: {}]
  %s4 = inlined_call_operand.vmem [shape: f32[8,1], index: 4, kind: input, shape index: {}]
  %s5 = inlined_call_operand.hbm [shape: f32[8,128], index: 5, kind: output, shape index: {}]
  %s6 = sld [smem:[#allocation0]]
  $region30: #{tpu_custom_call.1} parent=0
    _
  %s8 = ssub.s32 1, %s6
  %s9 = scalar_select 0, %s8, %s6
  $region1: #{tpu_custom_call.1} parent=0
    #allocation2 [shape = 'u8[4096]{0}', space=vmem, size = 0x1000, scoped, tag = 'output window, operand 0, single buffered']
    #allocation3 [shape = 's32[1]{0}', space=sflag, size = 0x4, scoped, tag = 'scoped memory for tpu_custom_call.1']
    %10 = vsyncpa [#allocation3], 0
    // Predicated region
    $region2: #{tpu_custom_call.1} parent=1 // pred_check
      _
    $region3: #{tpu_custom_call.1} parent=1 // pred_check_branch
      %12 = sbr.rel (0) target = $region5
    $region4: #{tpu_custom_call.1} parent=1 // pred_region
      _
    $region5: #{tpu_custom_call.1} parent=1 // pred_fallthru
      _
    // Predicated region
    $region6: #{tpu_custom_call.1} parent=1 // pred_check
      _
    $region7: #{tpu_custom_call.1} parent=1 // pred_check_branch
      %14 = sbr.rel (0) target = $region9
    $region8: #{tpu_custom_call.1} parent=1 // pred_region
      _
    $region9: #{tpu_custom_call.1} parent=1 // pred_fallthru
      _
    // Predicated region
    $region10: #{tpu_custom_call.1} parent=1 // pred_check
      _
    $region11: #{tpu_custom_call.1} parent=1 // pred_check_branch
      %16 = sbr.rel (0) target = $region13
    $region12: #{tpu_custom_call.1} parent=1 // pred_region
      _
    $region13: #{tpu_custom_call.1} parent=1 // pred_fallthru
      _
    // Predicated region
    $region14: #{tpu_custom_call.1} parent=1 // pred_check
      _
    $region15: #{tpu_custom_call.1} parent=1 // pred_check_branch
      %18 = sbr.rel (0) target = $region17
    $region16: #{tpu_custom_call.1} parent=1 // pred_region
      _
    $region17: #{tpu_custom_call.1} parent=1 // pred_fallthru
      _
    // Predicated region
    $region18: #{tpu_custom_call.1} parent=1 // pred_check
      _
    $region19: #{tpu_custom_call.1} parent=1 // pred_check_branch
      %20 = sbr.rel (0) target = $region21
    $region20: #{tpu_custom_call.1} parent=1 // pred_region
      _
    $region21: #{tpu_custom_call.1} parent=1 // pred_fallthru
      _
    %v21 = vld [vmem:[%s0] sm:$0xf]
    %v22 = vld [vmem:[%s1] sm:$0xff]
    %v23 = vld [vmem:[%s1 + $0x8] sm:$0xff]
    %v24 = vld [vmem:[%s2] sm:$0xff]
    %v25 = vld [vmem:[%s2 + $0x8] sm:$0xff]
    %27 = vset.pattern.permute.xlu0 0
    %28 = vperm.xlu0 %27, %v24
    %v29 = vpop.permute.xlu0 %28
    %32 = vset.pattern.permute.xlu0 0
    %33 = vperm.xlu0 %32, %v25
    %v34 = vpop.permute.xlu0 %33
    %vm36 = vcmask 31744
    %v38 = vsel %vm36, %v22, 0
    %v41 = vsel %vm36, %v23, 0
    %vm43 = vcmask 1043456
    %v45 = vsel %vm43, %v21, 0
    %47 = vmatprep.subr.mxu0 0.0
    %48 = vmatpush1.msra.mxu0 0.0
    %49 = vmatprep.subr.mxu0 0.0
    %50 = vmatpush1.msra.mxu0 0.0
    %51 = vmatprep.subr.mxu0 0.0
    %52 = vmatpush1.msra.mxu0 0.0
    %53 = vmatprep.subr.mxu0 0.0
    %54 = vmatpush1.msra.mxu0 0.0
    %55 = vmatprep.subr.mxu0 0.0
    %56 = vmatpush1.msra.mxu0 0.0
    %57 = vmatprep.subr.mxu0 0.0
    %58 = vmatpush1.msra.mxu0 0.0
    %59 = vmatprep.subr.mxu0 0.0
    %60 = vmatpush1.msra.mxu0 0.0
    %61 = vmatprep.subr.mxu0 0.0
    %62 = vmatpush1.msra.mxu0 0.0
    %63 = vmatprep.subr.mxu0 0.0
    %64 = vmatpush1.msra.mxu0 0.0
    %65 = vmatprep.subr.mxu0 0.0
    %66 = vmatpush1.msra.mxu0 0.0
    %67 = vmatprep.subr.mxu0 0.0
    %68 = vmatpush1.msra.mxu0 0.0
    %69 = vmatprep.subr.mxu0 0.0
    %70 = vmatpush1.msra.mxu0 0.0
    %71 = vmatprep.subr.mxu0 0.0
    %72 = vmatpush1.msra.mxu0 0.0
    %73 = vmatprep.subr.mxu0 0.0
    %74 = vmatpush1.msra.mxu0 0.0
    %75 = vmatprep.subr.mxu0 0.0
    %76 = vmatpush1.msra.mxu0 0.0
    %77 = vmatprep.subr.mxu0 0.0
    %78 = vmatpush1.msra.mxu0 %v45
    %79 = vmatprep.subr.mxu0 0.0
    %80 = vmatpush2.msra.mxu0 0.0
    %81 = vmatprep.subr.mxu0 0.0
    %82 = vmatpush2.msra.mxu0 0.0
    %83 = vmatprep.subr.mxu0 0.0
    %84 = vmatpush2.msra.mxu0 0.0
    %85 = vmatprep.subr.mxu0 0.0
    %86 = vmatpush2.msra.mxu0 0.0
    %87 = vmatprep.subr.mxu0 0.0
    %88 = vmatpush2.msra.mxu0 0.0
    %89 = vmatprep.subr.mxu0 0.0
    %90 = vmatpush2.msra.mxu0 0.0
    %91 = vmatprep.subr.mxu0 0.0
    %92 = vmatpush2.msra.mxu0 0.0
    %93 = vmatprep.subr.mxu0 0.0
    %94 = vmatpush2.msra.mxu0 0.0
    %95 = vmatprep.subr.mxu0 0.0
    %96 = vmatpush2.msra.mxu0 0.0
    %97 = vmatprep.subr.mxu0 0.0
    %98 = vmatpush2.msra.mxu0 0.0
    %99 = vmatprep.subr.mxu0 0.0
    %100 = vmatpush2.msra.mxu0 0.0
    %101 = vmatprep.subr.mxu0 0.0
    %102 = vmatpush2.msra.mxu0 0.0
    %103 = vmatprep.subr.mxu0 0.0
    %104 = vmatpush2.msra.mxu0 0.0
    %105 = vmatprep.subr.mxu0 0.0
    %106 = vmatpush2.msra.mxu0 0.0
    %107 = vmatprep.subr.mxu0 0.0
    %108 = vmatpush2.msra.mxu0 0.0
    %109 = vmatprep.subr.mxu0 0.0
    %110 = vmatpush2.msra.mxu0 0.0
    %111 = vmatprep.mubr.f32.mxu0 0.0
    %112 = vmatmul.mubr.f32.gmra.mxu0 %v38
    %v113 = vpop.f32.mrf.mxu0
    %v114 = vadd.f32 %v29, %v113
    %v115 = vpop.f32.mrf.mxu0
    %116 = vmatprep.mubr.f32.mxu0 0.0
    %117 = vmatmul.mubr.f32.gmra.mxu0 %v41
    %v118 = vpop.f32.mrf.mxu0
    %v119 = vadd.f32 %v34, %v118
    %v120 = vpop.f32.mrf.mxu0
    %121 = vdwg.mxu0
    %v122 = vmax.f32 %v114, 0.0
    %v123 = vmax.f32 %v119, 0.0
    %v124 = vld [vmem:[%s3] sm:$0xff]
    %v125 = vld [vmem:[%s4] sm:$0xff]
    %127 = vset.pattern.permute.xlu0 0
    %128 = vperm.xlu0 %127, %v125
    %v129 = vpop.permute.xlu0 %128
    %vm131 = vcmask 130048
    %v133 = vsel %vm131, %v124, 0
    %135 = vmatprep.subr.mxu0 0.0
    %136 = vmatpush1.msra.mxu0 0.0
    %137 = vmatprep.subr.mxu0 0.0
    %138 = vmatpush1.msra.mxu0 0.0
    %139 = vmatprep.subr.mxu0 0.0
    %140 = vmatpush1.msra.mxu0 0.0
    %141 = vmatprep.subr.mxu0 0.0
    %142 = vmatpush1.msra.mxu0 0.0
    %143 = vmatprep.subr.mxu0 0.0
    %144 = vmatpush1.msra.mxu0 0.0
    %145 = vmatprep.subr.mxu0 0.0
    %146 = vmatpush1.msra.mxu0 0.0
    %147 = vmatprep.subr.mxu0 0.0
    %148 = vmatpush1.msra.mxu0 0.0
    %149 = vmatprep.subr.mxu0 0.0
    %150 = vmatpush1.msra.mxu0 0.0
    %151 = vmatprep.subr.mxu0 0.0
    %152 = vmatpush1.msra.mxu0 0.0
    %153 = vmatprep.subr.mxu0 0.0
    %154 = vmatpush1.msra.mxu0 0.0
    %155 = vmatprep.subr.mxu0 0.0
    %156 = vmatpush1.msra.mxu0 0.0
    %157 = vmatprep.subr.mxu0 0.0
    %158 = vmatpush1.msra.mxu0 0.0
    %159 = vmatprep.subr.mxu0 0.0
    %160 = vmatpush1.msra.mxu0 0.0
    %161 = vmatprep.subr.mxu0 0.0
    %162 = vmatpush1.msra.mxu0 0.0
    %163 = vmatprep.subr.mxu0 0.0
    %164 = vmatpush1.msra.mxu0 %v123
    %165 = vmatprep.subr.mxu0 0.0
    %166 = vmatpush1.msra.mxu0 %v122
    %167 = vmatprep.subr.mxu0 0.0
    %168 = vmatpush2.msra.mxu0 0.0
    %169 = vmatprep.subr.mxu0 0.0
    %170 = vmatpush2.msra.mxu0 0.0
    %171 = vmatprep.subr.mxu0 0.0
    %172 = vmatpush2.msra.mxu0 0.0
    %173 = vmatprep.subr.mxu0 0.0
    %174 = vmatpush2.msra.mxu0 0.0
    %175 = vmatprep.subr.mxu0 0.0
    %176 = vmatpush2.msra.mxu0 0.0
    %177 = vmatprep.subr.mxu0 0.0
    %178 = vmatpush2.msra.mxu0 0.0
    %179 = vmatprep.subr.mxu0 0.0
    %180 = vmatpush2.msra.mxu0 0.0
    %181 = vmatprep.subr.mxu0 0.0
    %182 = vmatpush2.msra.mxu0 0.0
    %183 = vmatprep.subr.mxu0 0.0
    %184 = vmatpush2.msra.mxu0 0.0
    %185 = vmatprep.subr.mxu0 0.0
    %186 = vmatpush2.msra.mxu0 0.0
    %187 = vmatprep.subr.mxu0 0.0
    %188 = vmatpush2.msra.mxu0 0.0
    %189 = vmatprep.subr.mxu0 0.0
    %190 = vmatpush2.msra.mxu0 0.0
    %191 = vmatprep.subr.mxu0 0.0
    %192 = vmatpush2.msra.mxu0 0.0
    %193 = vmatprep.subr.mxu0 0.0
    %194 = vmatpush2.msra.mxu0 0.0
    %195 = vmatprep.subr.mxu0 0.0
    %196 = vmatpush2.msra.mxu0 0.0
    %197 = vmatprep.subr.mxu0 0.0
    %198 = vmatpush2.msra.mxu0 0.0
    %199 = vmatprep.mubr.f32.mxu0 0.0
    %200 = vmatmul.mubr.f32.gmra.mxu0 %v133
    %v201 = vpop.f32.mrf.mxu0
    %v202 = vadd.f32 %v129, %v201
    %v203 = vpop.f32.mrf.mxu0
    %204 = vdwg.mxu0
    %205 = vst [vmem:[#allocation2] sm:$0xff] %v202
    // Predicated region
    $region22: #{tpu_custom_call.1} parent=1 // pred_check
      _
    $region23: #{tpu_custom_call.1} parent=1 // pred_check_branch
      %207 = sbr.rel (0) target = $region25
    $region24: #{tpu_custom_call.1} parent=1 // pred_region
      %s209 = ssub.s32 128, 128
      %210 = vsyncadd [#allocation3], %s209
      %s212 = sshll.u32 [#allocation2], 4
      %s213 = int_to_ptr.vmem [resolvable:$true] %s212
      %215 = dma.vmem_to_hbm [thread:$0]  %s213, 128, %s5, [#allocation3]
    $region25: #{tpu_custom_call.1} parent=1 // pred_fallthru
      _
    // Predicated region
    $region26: #{tpu_custom_call.1} parent=1 // pred_check
      _
    $region27: #{tpu_custom_call.1} parent=1 // pred_check_branch
      %217 = sbr.rel (0) target = $region29
    $region28: #{tpu_custom_call.1} parent=1 // pred_region
      %218 = dma.done [#allocation3], 128
    $region29: #{tpu_custom_call.1} parent=1 // pred_fallthru
      _
    %219 = vsyncpa [#allocation3], 1

</llo_original>
